<compile_context>
chip_gen: v5e
topology: v5e:2x2
jax: 0.10.0
libtpu: 0.0.40
codegen_flags: <defaults>
</compile_context>

<pallas_src>
import functools

import jax
import jax.numpy as jnp
from jax import lax
from jax.experimental import pallas as pl
from jax.experimental.pallas import tpu as pltpu


def _vlayer_kernel(x_ref, mu_ref, sigma_ref, eps_ref, bias_ref, o_ref):
    # x_ref:     (S_blk, B, I)        activations for S_blk samples
    # mu_ref:    (I, O_pad)           variational mean   (sample-invariant)
    # sigma_ref: (I, O_pad)           softplus(theta_rho), hoisted to wrapper
    # eps_ref:   (S_blk, I, O_pad)    N(0,1) noise for the weight matrix
    # bias_ref:  (S_blk, 1, O_pad)    pre-sampled bias row
    # o_ref:     (S_blk, B, O_pad)    output
    mu = mu_ref[...]
    sigma = sigma_ref[...]

    def body(s, carry):
        w = mu + sigma * eps_ref[s]                          # (I, O_pad)
        y = jnp.dot(x_ref[s], w, preferred_element_type=jnp.float32)
        o_ref[s] = (y + bias_ref[s]).astype(o_ref.dtype)     # (1,O) broadcasts
        return carry

    lax.fori_loop(0, x_ref.shape[0], body, 0, unroll=True)


def _pick_s_blk(n_samples):
    # Largest divisor of S in {8,4,2} that still leaves >= 2 grid steps
    # (keeps the parallel axis useful on v7x's 2 TensorCores); else 1.
    for d in (8, 4, 2):
        if n_samples % d == 0 and n_samples // d >= 2:
            return d
    return 1


def _round_up(x, m):
    return (x + m - 1) // m * m


@functools.partial(jax.jit, static_argnames=("s_blk",))
def variational_layer_forward(x, theta_mu, theta_rho, eps, s_blk=None):
    """x: (S,B,I), theta_mu/theta_rho: (I+1,O), eps: (S,I+1,O) -> (S,B,O)."""
    S, B, I = x.shape
    Ip1, O = theta_mu.shape
    assert Ip1 == I + 1 and eps.shape == (S, Ip1, O)

    if s_blk is None:
        s_blk = _pick_s_blk(S)
    assert S % s_blk == 0

    # ---- plain-JAX prep: done once, outside the per-sample grid loop -------
    sigma = jax.nn.softplus(theta_rho)                 # stable softplus, hoisted
    mu_w, sigma_w = theta_mu[:-1], sigma[:-1]          # (I, O)
    eps_w = eps[:, :-1, :]                             # (S, I, O)
    # Bias row sampled in plain JAX (tiny: S*O elements).
    bias = theta_mu[-1] + sigma[-1] * eps[:, -1, :]    # (S, O)

    # Lane-dense padding of the O axis -> unmasked vector stores in-kernel.
    O_pad = _round_up(O, 128)
    pad = O_pad - O
    if pad:
        mu_w = jnp.pad(mu_w, ((0, 0), (0, pad)))
        sigma_w = jnp.pad(sigma_w, ((0, 0), (0, pad)))
        eps_w = jnp.pad(eps_w, ((0, 0), (0, 0), (0, pad)))
        bias = jnp.pad(bias, ((0, 0), (0, pad)))
    bias = bias[:, None, :]                            # (S, 1, O_pad)

    grid = (S // s_blk,)
    out_padded = pl.pallas_call(
        _vlayer_kernel,
        out_shape=jax.ShapeDtypeStruct((S, B, O_pad), jnp.float32),
        grid_spec=pltpu.PrefetchScalarGridSpec(
            num_scalar_prefetch=0,
            grid=grid,
            in_specs=[
                pl.BlockSpec((s_blk, B, I), lambda g: (g, 0, 0)),
                pl.BlockSpec((I, O_pad), lambda g: (0, 0)),        # invariant
                pl.BlockSpec((I, O_pad), lambda g: (0, 0)),        # invariant
                pl.BlockSpec((s_blk, I, O_pad), lambda g: (g, 0, 0)),
                pl.BlockSpec((s_blk, 1, O_pad), lambda g: (g, 0, 0)),
            ],
            out_specs=pl.BlockSpec((s_blk, B, O_pad), lambda g: (g, 0, 0)),
        ),
        compiler_params=pltpu.CompilerParams(
            dimension_semantics=("parallel",),
            vmem_limit_bytes=32 * 1024 * 1024,
        ),
    )(x, mu_w, sigma_w, eps_w, bias)

    return out_padded[..., :O]


def _reference_forward(x, theta_mu, theta_rho, eps):
    sigma = jnp.log1p(jnp.exp(theta_rho))
    w = theta_mu[None, :, :] + sigma[None, :, :] * eps            # (S, I+1, O)
    y = jnp.einsum("sbi,sio->sbo", x, w[:, :-1, :]) + w[:, -1, :][:, None, :]
    return y


if __name__ == "__main__":
    # Small shapes consistent with the module: n_samples=4, batch=8,
    # input_size=16, output_size=32 (input augmented by +1 row for the bias).
    n_samples, batch, input_size, output_size = 4, 8, 16, 32
    mu_init_1, mu_init_2, rho_init = -0.2, 0.2, -5.0

    key = jax.random.PRNGKey(0)
    k_x, k_mu, k_rho, k_eps = jax.random.split(key, 4)

    x = jax.random.normal(k_x, (n_samples, batch, input_size), dtype=jnp.float32)
    theta_mu = jax.random.uniform(
        k_mu, (input_size + 1, output_size),
        minval=mu_init_1, maxval=mu_init_2, dtype=jnp.float32)
    theta_rho = jax.random.uniform(
        k_rho, (input_size + 1, output_size),
        minval=rho_init, maxval=rho_init + 1.0, dtype=jnp.float32)
    # Deterministic stand-in for torch.randn in sample_weight().
    eps = jax.random.normal(
        k_eps, (n_samples, input_size + 1, output_size), dtype=jnp.float32)

    out = variational_layer_forward(x, theta_mu, theta_rho, eps)
    out = jax.block_until_ready(out)

    ref = _reference_forward(x, theta_mu, theta_rho, eps)
    assert out.shape == (n_samples, batch, output_size)
    assert jnp.allclose(out, ref, atol=1e-5, rtol=1e-5)

    print("KERNEL_OK")
</pallas_src>

<mosaic_0001>
module attributes {stable_mosaic.version = 11 : i64} {
  func.func @_vlayer_kernel(%arg0: i32, %arg1: memref<2x8x16xf32, #tpu.memory_space<vmem>>, %arg2: memref<16x128xf32, #tpu.memory_space<vmem>>, %arg3: memref<16x128xf32, #tpu.memory_space<vmem>>, %arg4: memref<2x16x128xf32, #tpu.memory_space<vmem>>, %arg5: memref<2x1x128xf32, #tpu.memory_space<vmem>>, %arg6: memref<2x8x128xf32, #tpu.memory_space<vmem>>) attributes {dimension_semantics = [#tpu.dimension_semantics<parallel>], iteration_bounds = array<i64: 2>, scalar_prefetch = 0 : i64, scratch_operands = 0 : i64, tpu.core_type = #tpu.core_type<tc>, window_params = [{transform_indices = @transform_0, window_bounds = array<i64: 2, 8, 16>}, {pipeline_mode = #tpu.pipeline_mode<synchronous>, transform_indices = @transform_1, window_bounds = array<i64: 16, 128>}, {pipeline_mode = #tpu.pipeline_mode<synchronous>, transform_indices = @transform_2, window_bounds = array<i64: 16, 128>}, {transform_indices = @transform_3, window_bounds = array<i64: 2, 16, 128>}, {transform_indices = @transform_4, window_bounds = array<i64: 2, 1, 128>}, {transform_indices = @transform_5, window_bounds = array<i64: 2, 8, 128>}]} {
    %c0 = arith.constant 0 : index
    %c0_0 = arith.constant 0 : index
    %0 = vector.load %arg2[%c0, %c0_0] : memref<16x128xf32, #tpu.memory_space<vmem>>, vector<16x128xf32>
    %c0_1 = arith.constant 0 : index
    %c0_2 = arith.constant 0 : index
    %1 = vector.load %arg3[%c0_1, %c0_2] : memref<16x128xf32, #tpu.memory_space<vmem>>, vector<16x128xf32>
    %c0_i32 = arith.constant 0 : i32
    %2 = arith.index_cast %c0_i32 : i32 to index
    %c0_3 = arith.constant 0 : index
    %c0_4 = arith.constant 0 : index
    %3 = vector.load %arg4[%2, %c0_3, %c0_4] : memref<2x16x128xf32, #tpu.memory_space<vmem>>, vector<1x16x128xf32>
    %4 = vector.shape_cast %3 : vector<1x16x128xf32> to vector<16x128xf32>
    %5 = arith.mulf %1, %4 : vector<16x128xf32>
    %6 = arith.addf %0, %5 : vector<16x128xf32>
    %7 = arith.index_cast %c0_i32 : i32 to index
    %c0_5 = arith.constant 0 : index
    %c0_6 = arith.constant 0 : index
    %8 = vector.load %arg1[%7, %c0_5, %c0_6] : memref<2x8x16xf32, #tpu.memory_space<vmem>>, vector<1x8x16xf32>
    %9 = vector.shape_cast %8 : vector<1x8x16xf32> to vector<8x16xf32>
    %cst = arith.constant dense<0.000000e+00> : vector<8x128xf32>
    %10 = tpu.matmul %9, %6, %cst {dimension_numbers = #tpu.dot_dimension_numbers<[1], [0], [0], [1], [0, 0, 1, 1], [], []>} : vector<8x16xf32>, vector<16x128xf32>, vector<8x128xf32> -> vector<8x128xf32>
    %11 = arith.index_cast %c0_i32 : i32 to index
    %c0_7 = arith.constant 0 : index
    %c0_8 = arith.constant 0 : index
    %12 = vector.load %arg5[%11, %c0_7, %c0_8] : memref<2x1x128xf32, #tpu.memory_space<vmem>>, vector<1x1x128xf32>
    %13 = vector.shape_cast %12 : vector<1x1x128xf32> to vector<1x128xf32>
    %14 = vector.broadcast %13 : vector<1x128xf32> to vector<8x128xf32>
    %15 = arith.addf %10, %14 : vector<8x128xf32>
    %16 = arith.index_cast %c0_i32 : i32 to index
    %c0_9 = arith.constant 0 : index
    %c0_10 = arith.constant 0 : index
    %17 = vector.load %arg6[%16, %c0_9, %c0_10] : memref<2x8x128xf32, #tpu.memory_space<vmem>>, vector<1x8x128xf32>
    %18 = vector.shape_cast %17 : vector<1x8x128xf32> to vector<8x128xf32>
    %19 = vector.shape_cast %15 : vector<8x128xf32> to vector<1x8x128xf32>
    tpu.vector_store %arg6[%16, %c0_9, %c0_10], %19 {strides = array<i32>} : memref<2x8x128xf32, #tpu.memory_space<vmem>>, vector<1x8x128xf32>,
    %c1_i32 = arith.constant 1 : i32
    %20 = arith.index_cast %c1_i32 : i32 to index
    %c0_11 = arith.constant 0 : index
    %c0_12 = arith.constant 0 : index
    %21 = vector.load %arg4[%20, %c0_11, %c0_12] : memref<2x16x128xf32, #tpu.memory_space<vmem>>, vector<1x16x128xf32>
    %22 = vector.shape_cast %21 : vector<1x16x128xf32> to vector<16x128xf32>
    %23 = arith.mulf %1, %22 : vector<16x128xf32>
    %24 = arith.addf %0, %23 : vector<16x128xf32>
    %25 = arith.index_cast %c1_i32 : i32 to index
    %c0_13 = arith.constant 0 : index
    %c0_14 = arith.constant 0 : index
    %26 = vector.load %arg1[%25, %c0_13, %c0_14] : memref<2x8x16xf32, #tpu.memory_space<vmem>>, vector<1x8x16xf32>
    %27 = vector.shape_cast %26 : vector<1x8x16xf32> to vector<8x16xf32>
    %cst_15 = arith.constant dense<0.000000e+00> : vector<8x128xf32>
    %28 = tpu.matmul %27, %24, %cst_15 {dimension_numbers = #tpu.dot_dimension_numbers<[1], [0], [0], [1], [0, 0, 1, 1], [], []>} : vector<8x16xf32>, vector<16x128xf32>, vector<8x128xf32> -> vector<8x128xf32>
    %29 = arith.index_cast %c1_i32 : i32 to index
    %c0_16 = arith.constant 0 : index
    %c0_17 = arith.constant 0 : index
    %30 = vector.load %arg5[%29, %c0_16, %c0_17] : memref<2x1x128xf32, #tpu.memory_space<vmem>>, vector<1x1x128xf32>
    %31 = vector.shape_cast %30 : vector<1x1x128xf32> to vector<1x128xf32>
    %32 = vector.broadcast %31 : vector<1x128xf32> to vector<8x128xf32>
    %33 = arith.addf %28, %32 : vector<8x128xf32>
    %34 = arith.index_cast %c1_i32 : i32 to index
    %c0_18 = arith.constant 0 : index
    %c0_19 = arith.constant 0 : index
    %35 = vector.load %arg6[%34, %c0_18, %c0_19] : memref<2x8x128xf32, #tpu.memory_space<vmem>>, vector<1x8x128xf32>
    %36 = vector.shape_cast %35 : vector<1x8x128xf32> to vector<8x128xf32>
    %37 = vector.shape_cast %33 : vector<8x128xf32> to vector<1x8x128xf32>
    tpu.vector_store %arg6[%34, %c0_18, %c0_19], %37 {strides = array<i32>} : memref<2x8x128xf32, #tpu.memory_space<vmem>>, vector<1x8x128xf32>,
    %c2_i32 = arith.constant 2 : i32
    return
  }
  func.func @transform_0(%arg0: i32) -> (i32, i32, i32) {
    %c0_i32 = arith.constant 0 : i32
    %c0_i32_0 = arith.constant 0 : i32
    %c0_i32_1 = arith.constant 0 : i32
    return %arg0, %c0_i32, %c0_i32_0 : i32, i32, i32
  }
  func.func @transform_1(%arg0: i32) -> (i32, i32) {
    %c0_i32 = arith.constant 0 : i32
    %c0_i32_0 = arith.constant 0 : i32
    %c0_i32_1 = arith.constant 0 : i32
    return %c0_i32, %c0_i32_0 : i32, i32
  }
  func.func @transform_2(%arg0: i32) -> (i32, i32) {
    %c0_i32 = arith.constant 0 : i32
    %c0_i32_0 = arith.constant 0 : i32
    %c0_i32_1 = arith.constant 0 : i32
    return %c0_i32, %c0_i32_0 : i32, i32
  }
  func.func @transform_3(%arg0: i32) -> (i32, i32, i32) {
    %c0_i32 = arith.constant 0 : i32
    %c0_i32_0 = arith.constant 0 : i32
    %c0_i32_1 = arith.constant 0 : i32
    return %arg0, %c0_i32, %c0_i32_0 : i32, i32, i32
  }
  func.func @transform_4(%arg0: i32) -> (i32, i32, i32) {
    %c0_i32 = arith.constant 0 : i32
    %c0_i32_0 = arith.constant 0 : i32
    %c0_i32_1 = arith.constant 0 : i32
    return %arg0, %c0_i32, %c0_i32_0 : i32, i32, i32
  }
  func.func @transform_5(%arg0: i32) -> (i32, i32, i32) {
    %c0_i32 = arith.constant 0 : i32
    %c0_i32_0 = arith.constant 0 : i32
    %c0_i32_1 = arith.constant 0 : i32
    return %arg0, %c0_i32, %c0_i32_0 : i32, i32, i32
  }
}

</mosaic_0001>

<llo_original>
// kernel: variational_layer_forward.1
$region0: #{variational_layer_forward.1}
  #allocation0 [shape = 'u32[]', space=smem, size = 0x4, offset = 0x4, fixed_abs, tag = 'smem constant byte address 0x4 - core index']
  #allocation1 [shape = 'u32[72,128]{1,0:T(1,128)}', space=vmem, size = 0x9000, scoped, tag = 'internal scratch']
  %s0 = inlined_call_operand.vmem [shape: f32[4,8,16], index: 0, kind: input, shape index: {}]
  %s1 = inlined_call_operand.vmem [shape: f32[16,128], index: 1, kind: input, shape index: {}]
  %s2 = inlined_call_operand.vmem [shape: f32[16,128], index: 2, kind: input, shape index: {}]
  %s3 = inlined_call_operand.vmem [shape: f32[4,16,128], index: 3, kind: input, shape index: {}]
  %s4 = inlined_call_operand.vmem [shape: f32[4,1,128], index: 4, kind: input, shape index: {}]
  %s5 = inlined_call_operand.hbm [shape: f32[4,8,128], index: 5, kind: output, shape index: {}]
  %s6 = sld [smem:[#allocation0]]
  $region53: #{variational_layer_forward.1} parent=0
    _
  %s8 = ssub.s32 1, %s6
  %s9 = scalar_select 0, %s8, %s6
  $region1: #{variational_layer_forward.1} parent=0
    #allocation2 [shape = 'u8[16384]{0}', space=vmem, size = 0x4000, scoped, tag = 'output window, operand 0']
    #allocation3 [shape = 's32[2]{0}', space=sflag, size = 0x8, scoped, tag = 'scoped memory for variational_layer_forward.1']
    %10 = vsyncpa [#allocation3], 0
    %s11 = scalar_lea.sflag [#allocation3], 1
    %12 = vsyncpa %s11, 0
    loop: start=0, step=1, limit=4
    $region2: #{variational_layer_forward.1} parent=1 // loop_pre_header
      _
    $region3: #{variational_layer_forward.1} parent=1 // loop_header
      %s14 = sphi 0, %s18
      %p15 = scmp.ge.s32.totalorder %s14, 4
      %s24 = sphi 0, %s26
      %s27 = sphi 0, %s24
      %s28 = sphi 0, %s27
      %s44 = sphi 0, %s28
      %s48 = sphi 0, %s48
      %s50 = sphi 0, %s48
      %s51 = sphi 0, %s50
      %s65 = sphi 0, %s51
      %s69 = sphi 0, %s69
      %s71 = sphi 0, %s69
      %s72 = sphi 0, %s71
      %s86 = sphi 0, %s72
      %s92 = sphi 0, %s94
      %s95 = sphi 0, %s92
      %s96 = sphi 0, %s95
      %s112 = sphi 0, %s96
      %s118 = sphi 0, %s120
      %s121 = sphi 0, %s118
      %s122 = sphi 0, %s121
      %s138 = sphi 0, %s122
      %s144 = sphi 0, %s146
      %s147 = sphi 0, %s144
      %s148 = sphi 0, %s147
      %s164 = sphi 0, %s148
    $region4: #{variational_layer_forward.1} parent=1 // loop_header_branch
      %17 = sbr.rel (%p15) target = $region8
    $region5: #{variational_layer_forward.1} parent=1 // loop_body
      %s19 = ssub.s32 %s14, 1
      %s20 = ssub.s32 %s14, 2
      %s21 = sadd.s32 %s14, 1
      %s22 = ssub.s32 %s14, %s21
      %p23 = scmp.eq.s32.totalorder %s22, 0
      %s25 = sadd.s32 %s24, 1
      %s26 = scalar_select %p23, %s24, %s25
      %p29 = pneg %p23
      %p30 = scmp.eq.s32.totalorder %s14, 1
      %p31 = por %p29, %p30
      %p32 = scmp.ne.s32.totalorder %s24, %s27
      %p33 = scmp.eq.s32.totalorder %s14, 0
      %p34 = por %p32, %p33
      %p35 = scmp.ne.s32.totalorder %s24, %s27
      %p36 = scmp.eq.s32.totalorder %s19, 1
      %p37 = por %p35, %p36
      %p38 = scmp.ne.s32.totalorder %s27, %s28
      %p39 = scmp.eq.s32.totalorder %s19, 0
      %p40 = por %p38, %p39
      %p41 = scmp.ne.s32.totalorder %s27, %s28
      %p42 = scmp.eq.s32.totalorder %s20, 1
      %p43 = por %p41, %p42
      %p45 = scmp.ne.s32.totalorder %s28, %s44
      %p46 = scmp.eq.s32.totalorder %s20, 0
      %p47 = por %p45, %p46
      %s49 = sadd.s32 %s48, 1
      %p52 = scmp.eq.s32.totalorder %s14, 1
      %p53 = scmp.ne.s32.totalorder %s48, %s50
      %p54 = scmp.eq.s32.totalorder %s14, 0
      %p55 = por %p53, %p54
      %p56 = scmp.ne.s32.totalorder %s48, %s50
      %p57 = scmp.eq.s32.totalorder %s19, 1
      %p58 = por %p56, %p57
      %p59 = scmp.ne.s32.totalorder %s50, %s51
      %p60 = scmp.eq.s32.totalorder %s19, 0
      %p61 = por %p59, %p60
      %p62 = scmp.ne.s32.totalorder %s50, %s51
      %p63 = scmp.eq.s32.totalorder %s20, 1
      %p64 = por %p62, %p63
      %p66 = scmp.ne.s32.totalorder %s51, %s65
      %p67 = scmp.eq.s32.totalorder %s20, 0
      %p68 = por %p66, %p67
      %s70 = sadd.s32 %s69, 1
      %p73 = scmp.eq.s32.totalorder %s14, 1
      %p74 = scmp.ne.s32.totalorder %s69, %s71
      %p75 = scmp.eq.s32.totalorder %s14, 0
      %p76 = por %p74, %p75
      %p77 = scmp.ne.s32.totalorder %s69, %s71
      %p78 = scmp.eq.s32.totalorder %s19, 1
      %p79 = por %p77, %p78
      %p80 = scmp.ne.s32.totalorder %s71, %s72
      %p81 = scmp.eq.s32.totalorder %s19, 0
      %p82 = por %p80, %p81
      %p83 = scmp.ne.s32.totalorder %s71, %s72
      %p84 = scmp.eq.s32.totalorder %s20, 1
      %p85 = por %p83, %p84
      %p87 = scmp.ne.s32.totalorder %s72, %s86
      %p88 = scmp.eq.s32.totalorder %s20, 0
      %p89 = por %p87, %p88
      %s90 = ssub.s32 %s14, %s21
      %p91 = scmp.eq.s32.totalorder %s90, 0
      %s93 = sadd.s32 %s92, 1
      %s94 = scalar_select %p91, %s92, %s93
      %p97 = pneg %p91
      %p98 = scmp.eq.s32.totalorder %s14, 1
      %p99 = por %p97, %p98
      %p100 = scmp.ne.s32.totalorder %s92, %s95
      %p101 = scmp.eq.s32.totalorder %s14, 0
      %p102 = por %p100, %p101
      %p103 = scmp.ne.s32.totalorder %s92, %s95
      %p104 = scmp.eq.s32.totalorder %s19, 1
      %p105 = por %p103, %p104
      %p106 = scmp.ne.s32.totalorder %s95, %s96
      %p107 = scmp.eq.s32.totalorder %s19, 0
      %p108 = por %p106, %p107
      %p109 = scmp.ne.s32.totalorder %s95, %s96
      %p110 = scmp.eq.s32.totalorder %s20, 1
      %p111 = por %p109, %p110
      %p113 = scmp.ne.s32.totalorder %s96, %s112
      %p114 = scmp.eq.s32.totalorder %s20, 0
      %p115 = por %p113, %p114
      %s116 = ssub.s32 %s14, %s21
      %p117 = scmp.eq.s32.totalorder %s116, 0
      %s119 = sadd.s32 %s118, 1
      %s120 = scalar_select %p117, %s118, %s119
      %p123 = pneg %p117
      %p124 = scmp.eq.s32.totalorder %s14, 1
      %p125 = por %p123, %p124
      %p126 = scmp.ne.s32.totalorder %s118, %s121
      %p127 = scmp.eq.s32.totalorder %s14, 0
      %p128 = por %p126, %p127
      %p129 = scmp.ne.s32.totalorder %s118, %s121
      %p130 = scmp.eq.s32.totalorder %s19, 1
      %p131 = por %p129, %p130
      %p132 = scmp.ne.s32.totalorder %s121, %s122
      %p133 = scmp.eq.s32.totalorder %s19, 0
      %p134 = por %p132, %p133
      %p135 = scmp.ne.s32.totalorder %s121, %s122
      %p136 = scmp.eq.s32.totalorder %s20, 1
      %p137 = por %p135, %p136
      %p139 = scmp.ne.s32.totalorder %s122, %s138
      %p140 = scmp.eq.s32.totalorder %s20, 0
      %p141 = por %p139, %p140
      %s142 = ssub.s32 %s14, %s21
      %p143 = scmp.eq.s32.totalorder %s142, 0
      %s145 = sadd.s32 %s144, 1
      %s146 = scalar_select %p143, %s144, %s145
      %p149 = pneg %p143
      %p150 = scmp.eq.s32.totalorder %s14, 1
      %p151 = por %p149, %p150
      %p152 = scmp.ne.s32.totalorder %s144, %s147
      %p153 = scmp.eq.s32.totalorder %s14, 0
      %p154 = por %p152, %p153
      %p155 = scmp.ne.s32.totalorder %s144, %s147
      %p156 = scmp.eq.s32.totalorder %s19, 1
      %p157 = por %p155, %p156
      %p158 = scmp.ne.s32.totalorder %s147, %s148
      %p159 = scmp.eq.s32.totalorder %s19, 0
      %p160 = por %p158, %p159
      %p161 = scmp.ne.s32.totalorder %s147, %s148
      %p162 = scmp.eq.s32.totalorder %s20, 1
      %p163 = por %p161, %p162
      %p165 = scmp.ne.s32.totalorder %s148, %s164
      %p166 = scmp.eq.s32.totalorder %s20, 0
      %p167 = por %p165, %p166
      %p168 = scmp.le.s32.totalorder 1, %s14
      %p169 = scmp.lt.s32.totalorder %s14, 3
      %p170 = pnand %p168, %p169
      %p171 = pneg %p170
      // Predicated region
      $region9: #{variational_layer_forward.1} parent=5 // pred_check
        _
      $region10: #{variational_layer_forward.1} parent=5 // pred_check_branch
        %173 = sbr.rel (%p170) target = $region12
      $region11: #{variational_layer_forward.1} parent=5 // pred_region
        %s174 = ssub.s32 %s14, 1
        // Predicated region
        $region13: #{variational_layer_forward.1} parent=11 // pred_check
          %p175 = pneg %p61
        $region14: #{variational_layer_forward.1} parent=11 // pred_check_branch
          %177 = sbr.rel (%p175) target = $region16
        $region15: #{variational_layer_forward.1} parent=11 // pred_region
          _
        $region16: #{variational_layer_forward.1} parent=11 // pred_fallthru
          _
        // Predicated region
        $region17: #{variational_layer_forward.1} parent=11 // pred_check
          %p178 = pneg %p82
        $region18: #{variational_layer_forward.1} parent=11 // pred_check_branch
          %180 = sbr.rel (%p178) target = $region20
        $region19: #{variational_layer_forward.1} parent=11 // pred_region
          _
        $region20: #{variational_layer_forward.1} parent=11 // pred_fallthru
          _
      $region12: #{variational_layer_forward.1} parent=5 // pred_fallthru
        _
      %p181 = scmp.lt.s32.totalorder %s14, 2
      // Predicated region
      $region21: #{variational_layer_forward.1} parent=5 // pred_check
        %p182 = pneg %p181
      $region22: #{variational_layer_forward.1} parent=5 // pred_check_branch
        %184 = sbr.rel (%p182) target = $region24
      $region23: #{variational_layer_forward.1} parent=5 // pred_region
        // Predicated region
        $region25: #{variational_layer_forward.1} parent=23 // pred_check
          %p185 = pneg %p34
        $region26: #{variational_layer_forward.1} parent=23 // pred_check_branch
          %187 = sbr.rel (%p185) target = $region28
        $region27: #{variational_layer_forward.1} parent=23 // pred_region
          %s188 = smul.u32 2, %s14
          %p189 = scmp.lt.s32.totalorder %s188, 3
          %s190 = scalar_select %p189, %s188, 3
          %s191 = smul.addr %s190, 8
          %s192 = scalar_lea.vmem %s0, %s191
          %s193 = smul.u32 2, %s14
        $region28: #{variational_layer_forward.1} parent=23 // pred_fallthru
          _
        // Predicated region
        $region29: #{variational_layer_forward.1} parent=23 // pred_check
          %p194 = pneg %p102
        $region30: #{variational_layer_forward.1} parent=23 // pred_check_branch
          %196 = sbr.rel (%p194) target = $region32
        $region31: #{variational_layer_forward.1} parent=23 // pred_region
          %s197 = smul.u32 2, %s14
          %p198 = scmp.lt.s32.totalorder %s197, 3
          %s199 = scalar_select %p198, %s197, 3
          %s200 = smul.addr %s199, 2
          %s201 = smul.addr %s200, 8
          %s202 = scalar_lea.vmem %s3, %s201
          %s203 = smul.u32 2, %s14
        $region32: #{variational_layer_forward.1} parent=23 // pred_fallthru
          _
        // Predicated region
        $region33: #{variational_layer_forward.1} parent=23 // pred_check
          %p204 = pneg %p128
        $region34: #{variational_layer_forward.1} parent=23 // pred_check_branch
          %206 = sbr.rel (%p204) target = $region36
        $region35: #{variational_layer_forward.1} parent=23 // pred_region
          %s207 = smul.u32 2, %s14
          %p208 = scmp.lt.s32.totalorder %s207, 3
          %s209 = scalar_select %p208, %s207, 3
          %s210 = scalar_lea.vmem %s4, %s209
          %s211 = smul.u32 2, %s14
        $region36: #{variational_layer_forward.1} parent=23 // pred_fallthru
          _
      $region24: #{variational_layer_forward.1} parent=5 // pred_fallthru
        _
      %p212 = scmp.le.s32.totalorder 1, %s14
      %p213 = scmp.lt.s32.totalorder %s14, 3
      %p214 = pnand %p212, %p213
      %p215 = pneg %p214
      // Predicated region
      $region37: #{variational_layer_forward.1} parent=5 // pred_check
        _
      $region38: #{variational_layer_forward.1} parent=5 // pred_check_branch
        %217 = sbr.rel (%p214) target = $region40
      $region39: #{variational_layer_forward.1} parent=5 // pred_region
        %s218 = ssub.s32 %s14, 1
        %s219 = smul.u32 2, %s19
        %p220 = scmp.lt.s32.totalorder %s219, 3
        %s221 = scalar_select %p220, %s219, 3
        %s222 = smul.addr %s221, 8
        %s223 = scalar_lea.vmem %s0, %s222
        %p224 = pneg %p40
        %p225 = pneg %p37
        %p226 = pneg %p61
        %p227 = pneg %p58
        %p228 = pneg %p82
        %p229 = pneg %p79
        %s230 = smul.u32 2, %s19
        %p231 = scmp.lt.s32.totalorder %s230, 3
        %s232 = scalar_select %p231, %s230, 3
        %s233 = smul.addr %s232, 2
        %s234 = smul.addr %s233, 8
        %s235 = scalar_lea.vmem %s3, %s234
        %p236 = pneg %p108
        %p237 = pneg %p105
        %s238 = smul.u32 2, %s19
        %p239 = scmp.lt.s32.totalorder %s238, 3
        %s240 = scalar_select %p239, %s238, 3
        %s241 = scalar_lea.vmem %s4, %s240
        %p242 = pneg %p134
        %p243 = pneg %p131
        %p244 = pneg %p160
        %p245 = pneg %p157
        %s246 = sand.u32 %s147, 1
        %s247 = scalar_lea.sflag [#allocation3], %s246
        %s248 = sand.u32 %s147, 1
        %s249 = smul.addr %s248, 16
        %s250 = scalar_lea.vmem [#allocation2], %s249
        %s251 = smul.u32 2, %s19
        %p252 = scmp.lt.s32.totalorder %s251, 3
        %s253 = scalar_select %p252, %s251, 3
        %s254 = smul.addr %s253, 8
        %s255 = scalar_lea.vmem %s0, %s254
        %s256 = smul.u32 2, %s19
        %s257 = smul.u32 2, %s19
        %p258 = scmp.lt.s32.totalorder %s257, 3
        %s259 = scalar_select %p258, %s257, 3
        %s260 = smul.addr %s259, 2
        %s261 = smul.addr %s260, 8
        %s262 = scalar_lea.vmem %s3, %s261
        %s263 = smul.u32 2, %s19
        %s264 = smul.u32 2, %s19
        %p265 = scmp.lt.s32.totalorder %s264, 3
        %s266 = scalar_select %p265, %s264, 3
        %s267 = scalar_lea.vmem %s4, %s266
        %s268 = smul.u32 2, %s19
        %s269 = smul.u32 2, %s19
        %v270 = vld [vmem:[%s1] sm:$0xff]
        %v271 = vld [vmem:[%s1 + $0x8] sm:$0xff]
        %v272 = vld [vmem:[%s2] sm:$0xff]
        %v273 = vld [vmem:[%s2 + $0x8] sm:$0xff]
        %v274 = vld [vmem:[%s262] sm:$0xff]
        %v275 = vld [vmem:[%s262 + $0x8] sm:$0xff]
        %v276 = vmul.f32 %v272, %v274
        %v277 = vmul.f32 %v273, %v275
        %v278 = vadd.f32 %v270, %v276
        %v279 = vadd.f32 %v271, %v277
        %v280 = vld [vmem:[%s255] sm:$0xff]
        %v281 = vld [vmem:[%s267] sm:$0x1]
        %v283 = vperm.slane %v281, 0
        %vm285 = vcmask 130048
        %v287 = vsel %vm285, %v280, 0
        %289 = vmatpush.msra.mxu0 0.0
        %290 = vmatpush.msra.mxu0 0.0
        %291 = vmatpush.msra.mxu0 0.0
        %292 = vmatpush.msra.mxu0 0.0
        %293 = vmatpush.msra.mxu0 0.0
        %294 = vmatpush.msra.mxu0 0.0
        %295 = vmatpush.msra.mxu0 0.0
        %296 = vmatpush.msra.mxu0 0.0
        %297 = vmatpush.msra.mxu0 0.0
        %298 = vmatpush.msra.mxu0 0.0
        %299 = vmatpush.msra.mxu0 0.0
        %300 = vmatpush.msra.mxu0 0.0
        %301 = vmatpush.msra.mxu0 0.0
        %302 = vmatpush.msra.mxu0 0.0
        %303 = vmatpush.msra.mxu0 %v279
        %304 = vmatpush.msra.mxu0 %v278
        %305 = vmatmul.f32.gmra.mxu0 %v287
        %v306 = vpop.f32.mrf.mxu0
        %v307 = vadd.f32 %v283, %v306
        %308 = vdwg.mxu0
        %309 = vst [vmem:[%s250] sm:$0xff] %v307
        %s310 = scalar_lea.vmem %s262, 16
        %v311 = vld [vmem:[%s310] sm:$0xff]
        %v312 = vld [vmem:[%s310 + $0x8] sm:$0xff]
        %v313 = vmul.f32 %v272, %v311
        %v314 = vmul.f32 %v273, %v312
        %v315 = vadd.f32 %v270, %v313
        %v316 = vadd.f32 %v271, %v314
        %s317 = scalar_lea.vmem %s255, 8
        %v318 = vld [vmem:[%s317] sm:$0xff]
        %s319 = scalar_lea.vmem %s267, 1
        %v320 = vld [vmem:[%s319] sm:$0x1]
        %v322 = vperm.slane %v320, 0
        %v325 = vsel %vm285, %v318, 0
        %327 = vmatpush.msra.mxu0 0.0
        %328 = vmatpush.msra.mxu0 0.0
        %329 = vmatpush.msra.mxu0 0.0
        %330 = vmatpush.msra.mxu0 0.0
        %331 = vmatpush.msra.mxu0 0.0
        %332 = vmatpush.msra.mxu0 0.0
        %333 = vmatpush.msra.mxu0 0.0
        %334 = vmatpush.msra.mxu0 0.0
        %335 = vmatpush.msra.mxu0 0.0
        %336 = vmatpush.msra.mxu0 0.0
        %337 = vmatpush.msra.mxu0 0.0
        %338 = vmatpush.msra.mxu0 0.0
        %339 = vmatpush.msra.mxu0 0.0
        %340 = vmatpush.msra.mxu0 0.0
        %341 = vmatpush.msra.mxu0 %v316
        %342 = vmatpush.msra.mxu0 %v315
        %343 = vmatmul.f32.gmra.mxu0 %v325
        %v344 = vpop.f32.mrf.mxu0
        %v345 = vadd.f32 %v322, %v344
        %346 = vdwg.mxu0
        %s347 = scalar_lea.vmem %s250, 8 [#allocation2]
        %348 = vst [vmem:[%s347] sm:$0xff] %v345
        %s349 = sand.u32 %s147, 1
        %s350 = scalar_lea.sflag [#allocation3], %s349
        %s351 = sand.u32 %s147, 1
        %s352 = smul.addr %s351, 16
        %s353 = scalar_lea.vmem [#allocation2], %s352
        // Predicated region
        $region41: #{variational_layer_forward.1} parent=39 // pred_check
          %p354 = pneg %p157
        $region42: #{variational_layer_forward.1} parent=39 // pred_check_branch
          %356 = sbr.rel (%p354) target = $region44
        $region43: #{variational_layer_forward.1} parent=39 // pred_region
          %s357 = smul.u32 2, %s19
          %359 = vsyncadd %s350, 0
          %s360 = smul.addr %s357, 8
          %s361 = scalar_lea.hbm %s5, %s360
          %s362 = sshll.u32 %s353, 4
          %s363 = int_to_ptr.vmem [resolvable:$true] %s362
          %s364 = sshll.u32 %s361, 4
          %s365 = int_to_ptr.hbm [resolvable:$true] %s364
          %370 = dma.vmem_to_hbm [thread:$0]  %s363, 256, %s365, %s350, 128, 128, 8
        $region44: #{variational_layer_forward.1} parent=39 // pred_fallthru
          _
      $region40: #{variational_layer_forward.1} parent=5 // pred_fallthru
        _
      %p371 = scmp.le.s32.totalorder 2, %s14
      // Predicated region
      $region45: #{variational_layer_forward.1} parent=5 // pred_check
        %p372 = pneg %p371
      $region46: #{variational_layer_forward.1} parent=5 // pred_check_branch
        %374 = sbr.rel (%p372) target = $region48
      $region47: #{variational_layer_forward.1} parent=5 // pred_region
        %s375 = ssub.s32 %s14, 2
        // Predicated region
        $region49: #{variational_layer_forward.1} parent=47 // pred_check
          %p376 = pneg %p163
        $region50: #{variational_layer_forward.1} parent=47 // pred_check_branch
          %378 = sbr.rel (%p376) target = $region52
        $region51: #{variational_layer_forward.1} parent=47 // pred_region
          %s379 = sand.u32 %s148, 1
          %s380 = scalar_lea.sflag [#allocation3], %s379
          %s381 = sand.u32 %s148, 1
          %s382 = smul.addr %s381, 16
          %s383 = scalar_lea.vmem [#allocation2], %s382
          %385 = dma.done %s380, 256
        $region52: #{variational_layer_forward.1} parent=47 // pred_fallthru
          _
      $region48: #{variational_layer_forward.1} parent=5 // pred_fallthru
        _
    $region6: #{variational_layer_forward.1} parent=1 // loop_footer
      %s18 = sadd.s32 1, %s14
    $region7: #{variational_layer_forward.1} parent=1 // loop_footer_branch
      %13 = sbr.rel target = $region3
    $region8: #{variational_layer_forward.1} parent=1 // loop_exit
      _
    %386 = vsyncpa [#allocation3], 1
    %s387 = scalar_lea.sflag [#allocation3], 1
    %388 = vsyncpa %s387, 1

</llo_original>
